<compile_context>
chip_gen: v6e
topology: v6e:2x2x1
jax: 0.10.0
libtpu: 0.0.40
codegen_flags: <defaults>
</compile_context>

<pallas_src>
import jax
import jax.numpy as jnp
from jax.experimental import pallas as pl
from jax.experimental.pallas import tpu as pltpu


def _round_up(x, m):
    return ((x + m - 1) // m) * m


# ----------------------------- Pallas kernel --------------------------------
def _denoise_kernel(frames_ref, wf_ref, wi_ref, bsr_ref, bsi_ref, out_ref):
    nfb = bsr_ref.shape[-1]                              # n_fft // 2
    f = frames_ref[...]                                  # (block_m, n_fft) bf16
    # packed forward DFT: lanes [0:nfb] = real bins 0..nfb-1,
    #                     lanes [nfb:2*nfb] = (Nyquist real, imag bins 1..nfb-1)
    conc = jnp.dot(f, wf_ref[...], preferred_element_type=jnp.float32)
    r = conc[:, :nfb]
    i = conc[:, nfb:]
    rr = r * r
    ii = i * i
    s = rr + ii
    # lane 0 of each half is a purely-real bin (DC / Nyquist): its own square is its mag^2
    is0 = jax.lax.broadcasted_iota(jnp.int32, (1, nfb), 1) == 0
    sq_r = jnp.where(is0, rr, s)
    sq_i = jnp.where(is0, ii, s)
    # clamp(mag - bias*strength, 0) / mag  ==  max(1 - (bias*strength) * rsqrt(mag^2), 0)
    ratio_r = jnp.maximum(1.0 - bsr_ref[...] * jax.lax.rsqrt(sq_r + 1e-30), 0.0)
    ratio_i = jnp.maximum(1.0 - bsi_ref[...] * jax.lax.rsqrt(sq_i + 1e-30), 0.0)
    x = conc * jnp.concatenate([ratio_r, ratio_i], axis=-1)
    # packed inverse one-sided DFT (synthesis hann window folded into wi)
    out_ref[...] = jnp.dot(x.astype(jnp.bfloat16), wi_ref[...],
                           preferred_element_type=jnp.float32)


def _stft_denoise_istft_frames(frames_bf16, wf, wi, bsr, bsi, block_m):
    Mp, n_fft = frames_bf16.shape
    nfb = n_fft // 2
    return pl.pallas_call(
        _denoise_kernel,
        out_shape=jax.ShapeDtypeStruct((Mp, n_fft), jnp.float32),
        grid=(Mp // block_m,),
        in_specs=[
            pl.BlockSpec((block_m, n_fft), lambda i: (i, 0)),   # frames (bf16)
            pl.BlockSpec((n_fft, n_fft), lambda i: (0, 0)),     # packed forward DFT (bf16)
            pl.BlockSpec((n_fft, n_fft), lambda i: (0, 0)),     # packed inverse DFT (bf16)
            pl.BlockSpec((1, nfb), lambda i: (0, 0)),           # bias*strength (real half)
            pl.BlockSpec((1, nfb), lambda i: (0, 0)),           # bias*strength (imag half)
        ],
        out_specs=pl.BlockSpec((block_m, n_fft), lambda i: (i, 0)),
        compiler_params=pltpu.CompilerParams(dimension_semantics=("parallel",)),
    )(frames_bf16, wf, wi, bsr, bsi)


# ------------------------------- JAX glue ------------------------------------
def _frame_indices(T, n_fft, hop):
    n_frames = 1 + T // hop
    idx = jnp.arange(n_frames)[:, None] * hop + jnp.arange(n_fft)[None, :]
    return idx, n_frames


def make_denoiser_params(bias_key, n_fft=256, n_overlap=4, bias_len=2048):
    """Deterministic parameter setup (packed DFT matrices, window, bias_spec)."""
    assert n_fft % 256 == 0, "n_fft must be a multiple of 256 (lane-aligned half-spectrum)"
    hop = n_fft // n_overlap
    n_freq = n_fft // 2 + 1
    NFB = n_fft // 2

    n = jnp.arange(n_fft, dtype=jnp.float32)
    k = jnp.arange(NFB, dtype=jnp.float32)
    w = 0.5 - 0.5 * jnp.cos(2.0 * jnp.pi * n / n_fft)            # periodic hann
    ang = 2.0 * jnp.pi * n[:, None] * k[None, :] / n_fft         # (n_fft, NFB)
    alt = 1.0 - 2.0 * (jnp.arange(n_fft) % 2).astype(jnp.float32)  # (-1)^n

    # packed forward matrix: [ w*cos | (Nyquist col, -w*sin for k>=1) ]  -> (n_fft, n_fft)
    fwd_cos = w[:, None] * jnp.cos(ang)
    fwd_sin = -(w[:, None] * jnp.sin(ang))
    fwd_sin = fwd_sin.at[:, 0].set(w * alt)                      # Nyquist real column
    wf = jnp.concatenate([fwd_cos, fwd_sin], axis=1)

    # packed inverse matrix: rows [ c_k*cos*w/N | (Nyquist row, -2*sin*w/N for k>=1) ]
    ck = jnp.where(k == 0, 1.0, 2.0)
    inv_cos = (ck[:, None] * jnp.cos(ang.T)) * w[None, :] / n_fft   # (NFB, n_fft)
    inv_sin = (-ck[:, None] * jnp.sin(ang.T)) * w[None, :] / n_fft
    inv_sin = inv_sin.at[0, :].set(alt * w / n_fft)                 # Nyquist row (c=1)
    wi = jnp.concatenate([inv_cos, inv_sin], axis=0)                # (n_fft, n_fft)

    # TODO(synk): the real module runs a WaveGlow vocoder on a zero mel to obtain the
    # bias audio; we synthesize a deterministic surrogate bias signal here instead.
    bias_audio = 0.01 * jax.random.normal(bias_key, (bias_len,), jnp.float32)
    pad = n_fft // 2
    xb = jnp.pad(bias_audio, (pad, pad), mode="reflect")
    frame0 = xb[:n_fft] * w                                         # STFT frame 0
    bias_spec = jnp.abs(jnp.fft.rfft(frame0)).astype(jnp.float32)   # (n_freq,)

    return dict(n_fft=n_fft, hop=hop, n_freq=n_freq, NFB=NFB, window=w,
                wf=wf.astype(jnp.bfloat16), wi=wi.astype(jnp.bfloat16),
                bias=bias_spec)


def denoiser_forward(audio, params, strength=0.0005, block_m_max=256):
    """Equivalent of Denoiser.forward(audio, strength). audio: (B, T) float32."""
    n_fft, hop, NFB = params["n_fft"], params["hop"], params["NFB"]
    w = params["window"]
    B, T = audio.shape
    pad = n_fft // 2

    # fold strength into the bias spectrum once; Nyquist bin rides in imag slot of bin 0
    bs = params["bias"] * jnp.float32(strength)                     # (NFB+1,)
    bsr = bs[:NFB][None, :]                                         # (1, NFB)
    bsi = bsr.at[0, 0].set(bs[NFB])

    # center=True / reflect pad, frame extraction in bf16 (halves gather HBM traffic)
    x = jnp.pad(audio, ((0, 0), (pad, pad)), mode="reflect").astype(jnp.bfloat16)
    idx, n_frames = _frame_indices(T, n_fft, hop)
    frames = x[:, idx]                                              # (B, n_frames, n_fft)
    M = B * n_frames
    frames2 = frames.reshape(M, n_fft)

    block_m = min(block_m_max, _round_up(M, 8))                     # cap block at workload
    Mp = _round_up(M, block_m)
    frames2 = jnp.pad(frames2, ((0, Mp - M), (0, 0)))

    yf = _stft_denoise_istft_frames(frames2, params["wf"], params["wi"], bsr, bsi, block_m)
    yf = yf[:M].reshape(B, n_frames, n_fft)

    # overlap-add + window-envelope normalization (torch.istft semantics), then trim pad
    Lpad = n_fft + (n_frames - 1) * hop
    out = jnp.zeros((B, Lpad), jnp.float32).at[:, idx].add(yf)
    env = jnp.zeros((Lpad,), jnp.float32).at[idx].add(jnp.broadcast_to(w * w, (n_frames, n_fft)))
    out = out / jnp.where(env > 1e-11, env, 1.0)
    return out[:, pad:Lpad - pad]                                   # length = (n_frames-1)*hop


def reference_forward(audio, params, strength=0.0005):
    """Pure-JAX f32 reference using rfft/irfft (same math as torch stft/istft)."""
    n_fft, hop, n_freq = params["n_fft"], params["hop"], params["n_freq"]
    w = params["window"]
    bias = params["bias"][:n_freq]
    B, T = audio.shape
    pad = n_fft // 2
    x = jnp.pad(audio, ((0, 0), (pad, pad)), mode="reflect")
    idx, n_frames = _frame_indices(T, n_fft, hop)
    frames = x[:, idx] * w
    spec = jnp.fft.rfft(frames, axis=-1)
    mag = jnp.abs(spec)
    ang = jnp.angle(spec)
    den = jnp.maximum(mag - bias * strength, 0.0)
    new = den * jnp.exp(1j * ang)
    yf = jnp.real(jnp.fft.irfft(new, n=n_fft, axis=-1)).astype(jnp.float32) * w
    Lpad = n_fft + (n_frames - 1) * hop
    out = jnp.zeros((B, Lpad), jnp.float32).at[:, idx].add(yf)
    env = jnp.zeros((Lpad,), jnp.float32).at[idx].add(jnp.broadcast_to(w * w, (n_frames, n_fft)))
    out = out / jnp.where(env > 1e-11, env, 1.0)
    return out[:, pad:Lpad - pad]


if __name__ == "__main__":
    key = jax.random.PRNGKey(0)
    k_audio, k_bias = jax.random.split(key)

    # small shapes: B=2 audio clips of T=1024 samples; filter_length=256, n_overlap=4
    B, T = 2, 1024
    n_fft, n_overlap = 256, 4
    audio = jax.random.normal(k_audio, (B, T), jnp.float32)

    params = make_denoiser_params(k_bias, n_fft=n_fft, n_overlap=n_overlap, bias_len=2048)

    out = denoiser_forward(audio, params, strength=0.0005)
    out = jax.block_until_ready(out)

    assert out.shape == (B, T), out.shape
    assert bool(jnp.all(jnp.isfinite(out)))

    ref = reference_forward(audio, params, strength=0.0005)
    max_err = float(jnp.max(jnp.abs(out - ref)))
    # bf16 matmul operands (f32 accumulation) -> looser tolerance than the pure-f32 path
    assert max_err < 1e-1, f"max abs error vs reference: {max_err}"

    print("KERNEL_OK")
</pallas_src>

<mosaic_0001>
module attributes {stable_mosaic.version = 11 : i64} {
  func.func @_denoise_kernel(%arg0: i32, %arg1: memref<40x256xbf16, #tpu.memory_space<vmem>>, %arg2: memref<256x256xbf16, #tpu.memory_space<vmem>>, %arg3: memref<256x256xbf16, #tpu.memory_space<vmem>>, %arg4: memref<1x128xf32, #tpu.memory_space<vmem>>, %arg5: memref<1x128xf32, #tpu.memory_space<vmem>>, %arg6: memref<40x256xf32, #tpu.memory_space<vmem>>) attributes {dimension_semantics = [#tpu.dimension_semantics<parallel>], iteration_bounds = array<i64: 1>, scalar_prefetch = 0 : i64, scratch_operands = 0 : i64, tpu.core_type = #tpu.core_type<tc>, window_params = [{transform_indices = @transform_0, window_bounds = array<i64: 40, 256>}, {pipeline_mode = #tpu.pipeline_mode<synchronous>, transform_indices = @transform_1, window_bounds = array<i64: 256, 256>}, {pipeline_mode = #tpu.pipeline_mode<synchronous>, transform_indices = @transform_2, window_bounds = array<i64: 256, 256>}, {pipeline_mode = #tpu.pipeline_mode<synchronous>, transform_indices = @transform_3, window_bounds = array<i64: 1, 128>}, {pipeline_mode = #tpu.pipeline_mode<synchronous>, transform_indices = @transform_4, window_bounds = array<i64: 1, 128>}, {transform_indices = @transform_5, window_bounds = array<i64: 40, 256>}]} {
    %c0 = arith.constant 0 : index
    %c0_0 = arith.constant 0 : index
    %0 = vector.load %arg1[%c0, %c0_0] : memref<40x256xbf16, #tpu.memory_space<vmem>>, vector<40x256xbf16>
    %c0_1 = arith.constant 0 : index
    %c0_2 = arith.constant 0 : index
    %1 = vector.load %arg2[%c0_1, %c0_2] : memref<256x256xbf16, #tpu.memory_space<vmem>>, vector<256x256xbf16>
    %cst = arith.constant dense<0.000000e+00> : vector<40x256xf32>
    %2 = tpu.matmul %0, %1, %cst {dimension_numbers = #tpu.dot_dimension_numbers<[1], [0], [0], [1], [0, 0, 1, 1], [], []>} : vector<40x256xbf16>, vector<256x256xbf16>, vector<40x256xf32> -> vector<40x256xf32>
    %3 = vector.extract_strided_slice %2 {offsets = [0, 0], sizes = [40, 128], strides = [1, 1]} : vector<40x256xf32> to vector<40x128xf32>
    %4 = vector.extract_strided_slice %2 {offsets = [0, 128], sizes = [40, 128], strides = [1, 1]} : vector<40x256xf32> to vector<40x128xf32>
    %5 = arith.mulf %3, %3 : vector<40x128xf32>
    %6 = arith.mulf %4, %4 : vector<40x128xf32>
    %7 = arith.addf %5, %6 : vector<40x128xf32>
    %8 = tpu.iota {dimensions = array<i32: 1>} : vector<1x128xi32>
    %c0_i32 = arith.constant 0 : i32
    %9 = vector.broadcast %c0_i32 : i32 to vector<1x128xi32>
    %10 = arith.cmpi eq, %8, %9 : vector<1x128xi32>
    %11 = vector.shape_cast %10 : vector<1x128xi1> to vector<1x128xi1>
    %12 = vector.broadcast %11 : vector<1x128xi1> to vector<40x128xi1>
    %13 = arith.select %12, %5, %7 : vector<40x128xi1>, vector<40x128xf32>
    %14 = vector.shape_cast %10 : vector<1x128xi1> to vector<1x128xi1>
    %15 = vector.broadcast %14 : vector<1x128xi1> to vector<40x128xi1>
    %16 = arith.select %15, %6, %7 : vector<40x128xi1>, vector<40x128xf32>
    %c0_3 = arith.constant 0 : index
    %c0_4 = arith.constant 0 : index
    %17 = vector.load %arg4[%c0_3, %c0_4] : memref<1x128xf32, #tpu.memory_space<vmem>>, vector<1x128xf32>
    %cst_5 = arith.constant 1.000000e-30 : f32
    %18 = vector.broadcast %cst_5 : f32 to vector<40x128xf32>
    %19 = arith.addf %13, %18 : vector<40x128xf32>
    %20 = math.rsqrt %19 : vector<40x128xf32>
    %21 = vector.broadcast %17 : vector<1x128xf32> to vector<40x128xf32>
    %22 = arith.mulf %21, %20 : vector<40x128xf32>
    %cst_6 = arith.constant 1.000000e+00 : f32
    %23 = vector.broadcast %cst_6 : f32 to vector<40x128xf32>
    %24 = arith.subf %23, %22 : vector<40x128xf32>
    %cst_7 = arith.constant 0.000000e+00 : f32
    %25 = vector.broadcast %cst_7 : f32 to vector<40x128xf32>
    %26 = arith.maximumf %24, %25 : vector<40x128xf32>
    %c0_8 = arith.constant 0 : index
    %c0_9 = arith.constant 0 : index
    %27 = vector.load %arg5[%c0_8, %c0_9] : memref<1x128xf32, #tpu.memory_space<vmem>>, vector<1x128xf32>
    %cst_10 = arith.constant 1.000000e-30 : f32
    %28 = vector.broadcast %cst_10 : f32 to vector<40x128xf32>
    %29 = arith.addf %16, %28 : vector<40x128xf32>
    %30 = math.rsqrt %29 : vector<40x128xf32>
    %31 = vector.broadcast %27 : vector<1x128xf32> to vector<40x128xf32>
    %32 = arith.mulf %31, %30 : vector<40x128xf32>
    %cst_11 = arith.constant 1.000000e+00 : f32
    %33 = vector.broadcast %cst_11 : f32 to vector<40x128xf32>
    %34 = arith.subf %33, %32 : vector<40x128xf32>
    %cst_12 = arith.constant 0.000000e+00 : f32
    %35 = vector.broadcast %cst_12 : f32 to vector<40x128xf32>
    %36 = arith.maximumf %34, %35 : vector<40x128xf32>
    %37 = tpu.concatenate %26, %36 in 1 : vector<40x128xf32>, vector<40x128xf32> -> vector<40x256xf32>
    %38 = arith.mulf %2, %37 : vector<40x256xf32>
    %39 = arith.truncf %38 : vector<40x256xf32> to vector<40x256xbf16>
    %c0_13 = arith.constant 0 : index
    %c0_14 = arith.constant 0 : index
    %40 = vector.load %arg3[%c0_13, %c0_14] : memref<256x256xbf16, #tpu.memory_space<vmem>>, vector<256x256xbf16>
    %cst_15 = arith.constant dense<0.000000e+00> : vector<40x256xf32>
    %41 = tpu.matmul %39, %40, %cst_15 {dimension_numbers = #tpu.dot_dimension_numbers<[1], [0], [0], [1], [0, 0, 1, 1], [], []>} : vector<40x256xbf16>, vector<256x256xbf16>, vector<40x256xf32> -> vector<40x256xf32>
    %c0_16 = arith.constant 0 : index
    %c0_17 = arith.constant 0 : index
    %42 = vector.load %arg6[%c0_16, %c0_17] : memref<40x256xf32, #tpu.memory_space<vmem>>, vector<40x256xf32>
    tpu.vector_store %arg6[%c0_16, %c0_17], %41 {strides = array<i32>} : memref<40x256xf32, #tpu.memory_space<vmem>>, vector<40x256xf32>,
    return
  }
  func.func @transform_0(%arg0: i32) -> (i32, i32) {
    %c0_i32 = arith.constant 0 : i32
    %c0_i32_0 = arith.constant 0 : i32
    return %arg0, %c0_i32 : i32, i32
  }
  func.func @transform_1(%arg0: i32) -> (i32, i32) {
    %c0_i32 = arith.constant 0 : i32
    %c0_i32_0 = arith.constant 0 : i32
    %c0_i32_1 = arith.constant 0 : i32
    return %c0_i32, %c0_i32_0 : i32, i32
  }
  func.func @transform_2(%arg0: i32) -> (i32, i32) {
    %c0_i32 = arith.constant 0 : i32
    %c0_i32_0 = arith.constant 0 : i32
    %c0_i32_1 = arith.constant 0 : i32
    return %c0_i32, %c0_i32_0 : i32, i32
  }
  func.func @transform_3(%arg0: i32) -> (i32, i32) {
    %c0_i32 = arith.constant 0 : i32
    %c0_i32_0 = arith.constant 0 : i32
    %c0_i32_1 = arith.constant 0 : i32
    return %c0_i32, %c0_i32_0 : i32, i32
  }
  func.func @transform_4(%arg0: i32) -> (i32, i32) {
    %c0_i32 = arith.constant 0 : i32
    %c0_i32_0 = arith.constant 0 : i32
    %c0_i32_1 = arith.constant 0 : i32
    return %c0_i32, %c0_i32_0 : i32, i32
  }
  func.func @transform_5(%arg0: i32) -> (i32, i32) {
    %c0_i32 = arith.constant 0 : i32
    %c0_i32_0 = arith.constant 0 : i32
    return %arg0, %c0_i32 : i32, i32
  }
}

</mosaic_0001>

<llo_original>
// kernel: tpu_custom_call.1
$region0: #{tpu_custom_call.1}
  #allocation0 [shape = 'u32[]', space=smem, size = 0x4, offset = 0x4, fixed_abs, tag = 'smem constant byte address 0x4 - core index']
  #allocation1 [shape = 'u32[144,128]{1,0:T(1,128)}', space=vmem, size = 0x12000, scoped, tag = 'internal scratch']
  %s0 = inlined_call_operand.hbm [shape: bf16[40,256], index: 0, kind: input, shape index: {}]
  %s1 = inlined_call_operand.hbm [shape: bf16[256,256], index: 1, kind: input, shape index: {}]
  %s2 = inlined_call_operand.hbm [shape: bf16[256,256], index: 2, kind: input, shape index: {}]
  %s3 = inlined_call_operand.vmem [shape: f32[1,128], index: 3, kind: input, shape index: {}]
  %s4 = inlined_call_operand.vmem [shape: f32[1,128], index: 4, kind: input, shape index: {}]
  %s5 = inlined_call_operand.hbm [shape: f32[40,256], index: 5, kind: output, shape index: {}]
  %s6 = sld [smem:[#allocation0]]
  $region42: #{tpu_custom_call.1} parent=0
    _
  %s8 = ssub.s32 1, %s6
  %s9 = scalar_select 0, %s8, %s6
  $region1: #{tpu_custom_call.1} parent=0
    #allocation2 [shape = 'u8[20480]{0}', space=vmem, size = 0x5000, scoped, tag = 'input window, operand 0, single buffered']
    #allocation3 [shape = 's32[1]{0}', space=sflag, size = 0x4, scoped, tag = 'scoped memory for tpu_custom_call.1']
    #allocation4 [shape = 's32[1]{0}', space=sflag, size = 0x4, scoped, tag = 'scoped memory for tpu_custom_call.1']
    #allocation5 [shape = 'u8[131072]{0}', space=vmem, size = 0x20000, scoped, tag = 'input window, operand 1, single buffered']
    #allocation6 [shape = 's32[1]{0}', space=sflag, size = 0x4, scoped, tag = 'scoped memory for tpu_custom_call.1']
    #allocation7 [shape = 'u8[131072]{0}', space=vmem, size = 0x20000, scoped, tag = 'input window, operand 2, single buffered']
    #allocation8 [shape = 'u8[40960]{0}', space=vmem, size = 0xa000, scoped, tag = 'output window, operand 0, single buffered']
    %10 = vsyncpa [#allocation3], 0
    %11 = vsyncpa [#allocation6], 0
    %12 = vsyncpa [#allocation4], 0
    // Predicated region
    $region2: #{tpu_custom_call.1} parent=1 // pred_check
      _
    $region3: #{tpu_custom_call.1} parent=1 // pred_check_branch
      %14 = sbr.rel (0) target = $region5
    $region4: #{tpu_custom_call.1} parent=1 // pred_region
      %s16 = ssub.s32 640, 640
      %17 = vsyncadd [#allocation3], %s16
      %s18 = sshll.u32 [#allocation2], 4
      %s19 = int_to_ptr.vmem [resolvable:$true] %s18
      %24 = dma.hbm_to_vmem [thread:$0]  %s0, 640, %s19, [#allocation3], 128, 128, 8
    $region5: #{tpu_custom_call.1} parent=1 // pred_fallthru
      _
    // Predicated region
    $region6: #{tpu_custom_call.1} parent=1 // pred_check
      _
    $region7: #{tpu_custom_call.1} parent=1 // pred_check_branch
      %26 = sbr.rel (0) target = $region9
    $region8: #{tpu_custom_call.1} parent=1 // pred_region
      %s28 = ssub.s32 4096, 4096
      %29 = vsyncadd [#allocation6], %s28
      %s30 = sshll.u32 [#allocation5], 4
      %s31 = int_to_ptr.vmem [resolvable:$true] %s30
      %36 = dma.hbm_to_vmem [thread:$0]  %s1, 4096, %s31, [#allocation6], 128, 128, 8
    $region9: #{tpu_custom_call.1} parent=1 // pred_fallthru
      _
    // Predicated region
    $region10: #{tpu_custom_call.1} parent=1 // pred_check
      _
    $region11: #{tpu_custom_call.1} parent=1 // pred_check_branch
      %38 = sbr.rel (0) target = $region13
    $region12: #{tpu_custom_call.1} parent=1 // pred_region
      %s40 = ssub.s32 4096, 4096
      %41 = vsyncadd [#allocation6], %s40
      %s42 = sshll.u32 [#allocation7], 4
      %s43 = int_to_ptr.vmem [resolvable:$true] %s42
      %48 = dma.hbm_to_vmem [thread:$0]  %s2, 4096, %s43, [#allocation6], 128, 128, 8
    $region13: #{tpu_custom_call.1} parent=1 // pred_fallthru
      _
    // Predicated region
    $region14: #{tpu_custom_call.1} parent=1 // pred_check
      _
    $region15: #{tpu_custom_call.1} parent=1 // pred_check_branch
      %50 = sbr.rel (0) target = $region17
    $region16: #{tpu_custom_call.1} parent=1 // pred_region
      _
    $region17: #{tpu_custom_call.1} parent=1 // pred_fallthru
      _
    // Predicated region
    $region18: #{tpu_custom_call.1} parent=1 // pred_check
      _
    $region19: #{tpu_custom_call.1} parent=1 // pred_check_branch
      %52 = sbr.rel (0) target = $region21
    $region20: #{tpu_custom_call.1} parent=1 // pred_region
      _
    $region21: #{tpu_custom_call.1} parent=1 // pred_fallthru
      _
    // Predicated region
    $region22: #{tpu_custom_call.1} parent=1 // pred_check
      _
    $region23: #{tpu_custom_call.1} parent=1 // pred_check_branch
      %54 = sbr.rel (0) target = $region25
    $region24: #{tpu_custom_call.1} parent=1 // pred_region
      %55 = dma.done [#allocation3], 640
    $region25: #{tpu_custom_call.1} parent=1 // pred_fallthru
      _
    // Predicated region
    $region26: #{tpu_custom_call.1} parent=1 // pred_check
      _
    $region27: #{tpu_custom_call.1} parent=1 // pred_check_branch
      %57 = sbr.rel (0) target = $region29
    $region28: #{tpu_custom_call.1} parent=1 // pred_region
      %58 = dma.done [#allocation6], 4096
    $region29: #{tpu_custom_call.1} parent=1 // pred_fallthru
      _
    // Predicated region
    $region30: #{tpu_custom_call.1} parent=1 // pred_check
      _
    $region31: #{tpu_custom_call.1} parent=1 // pred_check_branch
      %60 = sbr.rel (0) target = $region33
    $region32: #{tpu_custom_call.1} parent=1 // pred_region
      %61 = dma.done [#allocation6], 4096
    $region33: #{tpu_custom_call.1} parent=1 // pred_fallthru
      _
    %v62 = vld [vmem:[#allocation2] sm:$0xff]
    %v63 = vld [vmem:[#allocation2 + $0x8] sm:$0xff]
    %v64 = vld [vmem:[#allocation2 + $0x10] sm:$0xff]
    %v65 = vld [vmem:[#allocation2 + $0x18] sm:$0xff]
    %v66 = vld [vmem:[#allocation2 + $0x20] sm:$0xff]
    %v67 = vld [vmem:[#allocation5] sm:$0xff]
    %v68 = vld [vmem:[#allocation5 + $0x8] sm:$0xff]
    %v69 = vld [vmem:[#allocation5 + $0x10] sm:$0xff]
    %v70 = vld [vmem:[#allocation5 + $0x18] sm:$0xff]
    %v71 = vld [vmem:[#allocation5 + $0x20] sm:$0xff]
    %v72 = vld [vmem:[#allocation5 + $0x28] sm:$0xff]
    %v73 = vld [vmem:[#allocation5 + $0x30] sm:$0xff]
    %v74 = vld [vmem:[#allocation5 + $0x38] sm:$0xff]
    %v75 = vld [vmem:[#allocation5 + $0x40] sm:$0xff]
    %v76 = vld [vmem:[#allocation5 + $0x48] sm:$0xff]
    %v77 = vld [vmem:[#allocation5 + $0x50] sm:$0xff]
    %v78 = vld [vmem:[#allocation5 + $0x58] sm:$0xff]
    %v79 = vld [vmem:[#allocation5 + $0x60] sm:$0xff]
    %v80 = vld [vmem:[#allocation5 + $0x68] sm:$0xff]
    %v81 = vld [vmem:[#allocation5 + $0x70] sm:$0xff]
    %v82 = vld [vmem:[#allocation5 + $0x78] sm:$0xff]
    %v83 = vld [vmem:[#allocation5 + $0x80] sm:$0xff]
    %v84 = vld [vmem:[#allocation5 + $0x88] sm:$0xff]
    %v85 = vld [vmem:[#allocation5 + $0x90] sm:$0xff]
    %v86 = vld [vmem:[#allocation5 + $0x98] sm:$0xff]
    %v87 = vld [vmem:[#allocation5 + $0xa0] sm:$0xff]
    %v88 = vld [vmem:[#allocation5 + $0xa8] sm:$0xff]
    %v89 = vld [vmem:[#allocation5 + $0xb0] sm:$0xff]
    %v90 = vld [vmem:[#allocation5 + $0xb8] sm:$0xff]
    %v91 = vld [vmem:[#allocation5 + $0xc0] sm:$0xff]
    %v92 = vld [vmem:[#allocation5 + $0xc8] sm:$0xff]
    %v93 = vld [vmem:[#allocation5 + $0xd0] sm:$0xff]
    %v94 = vld [vmem:[#allocation5 + $0xd8] sm:$0xff]
    %v95 = vld [vmem:[#allocation5 + $0xe0] sm:$0xff]
    %v96 = vld [vmem:[#allocation5 + $0xe8] sm:$0xff]
    %v97 = vld [vmem:[#allocation5 + $0xf0] sm:$0xff]
    %v98 = vld [vmem:[#allocation5 + $0xf8] sm:$0xff]
    %v104 = vunpack.c.l.b16 %v62
    %v105 = vunpack.c.h.b16 %v62
    %v106 = vunpack.c.l.b16 %v63
    %v107 = vunpack.c.h.b16 %v63
    %v108 = vunpack.c.l.b16 %v64
    %v109 = vunpack.c.h.b16 %v64
    %v110 = vunpack.c.l.b16 %v65
    %v111 = vunpack.c.h.b16 %v65
    %v112 = vunpack.c.l.b16 %v66
    %v113 = vunpack.c.h.b16 %v66
    %v114 = vpack.c.b16 %v106, %v104
    %v115 = vpack.c.b16 %v107, %v105
    %v116 = vpack.c.b16 %v110, %v108
    %v117 = vpack.c.b16 %v111, %v109
    %v118 = vpack.c.b16 %v112, %v112
    %v119 = vpack.c.b16 %v113, %v113
    %v158 = vunpack.c.l.b16 %v67
    %v159 = vunpack.c.h.b16 %v67
    %v160 = vunpack.c.l.b16 %v68
    %v161 = vunpack.c.h.b16 %v68
    %v162 = vunpack.c.l.b16 %v69
    %v163 = vunpack.c.h.b16 %v69
    %v164 = vunpack.c.l.b16 %v70
    %v165 = vunpack.c.h.b16 %v70
    %v166 = vunpack.c.l.b16 %v71
    %v167 = vunpack.c.h.b16 %v71
    %v168 = vunpack.c.l.b16 %v72
    %v169 = vunpack.c.h.b16 %v72
    %v170 = vunpack.c.l.b16 %v73
    %v171 = vunpack.c.h.b16 %v73
    %v172 = vunpack.c.l.b16 %v74
    %v173 = vunpack.c.h.b16 %v74
    %v174 = vunpack.c.l.b16 %v75
    %v175 = vunpack.c.h.b16 %v75
    %v176 = vunpack.c.l.b16 %v76
    %v177 = vunpack.c.h.b16 %v76
    %v178 = vunpack.c.l.b16 %v77
    %v179 = vunpack.c.h.b16 %v77
    %v180 = vunpack.c.l.b16 %v78
    %v181 = vunpack.c.h.b16 %v78
    %v182 = vunpack.c.l.b16 %v79
    %v183 = vunpack.c.h.b16 %v79
    %v184 = vunpack.c.l.b16 %v80
    %v185 = vunpack.c.h.b16 %v80
    %v186 = vunpack.c.l.b16 %v81
    %v187 = vunpack.c.h.b16 %v81
    %v188 = vunpack.c.l.b16 %v82
    %v189 = vunpack.c.h.b16 %v82
    %v190 = vunpack.c.l.b16 %v83
    %v191 = vunpack.c.h.b16 %v83
    %v192 = vunpack.c.l.b16 %v84
    %v193 = vunpack.c.h.b16 %v84
    %v194 = vunpack.c.l.b16 %v85
    %v195 = vunpack.c.h.b16 %v85
    %v196 = vunpack.c.l.b16 %v86
    %v197 = vunpack.c.h.b16 %v86
    %v198 = vunpack.c.l.b16 %v87
    %v199 = vunpack.c.h.b16 %v87
    %v200 = vunpack.c.l.b16 %v88
    %v201 = vunpack.c.h.b16 %v88
    %v202 = vunpack.c.l.b16 %v89
    %v203 = vunpack.c.h.b16 %v89
    %v204 = vunpack.c.l.b16 %v90
    %v205 = vunpack.c.h.b16 %v90
    %v206 = vunpack.c.l.b16 %v91
    %v207 = vunpack.c.h.b16 %v91
    %v208 = vunpack.c.l.b16 %v92
    %v209 = vunpack.c.h.b16 %v92
    %v210 = vunpack.c.l.b16 %v93
    %v211 = vunpack.c.h.b16 %v93
    %v212 = vunpack.c.l.b16 %v94
    %v213 = vunpack.c.h.b16 %v94
    %v214 = vunpack.c.l.b16 %v95
    %v215 = vunpack.c.h.b16 %v95
    %v216 = vunpack.c.l.b16 %v96
    %v217 = vunpack.c.h.b16 %v96
    %v218 = vunpack.c.l.b16 %v97
    %v219 = vunpack.c.h.b16 %v97
    %v220 = vunpack.c.l.b16 %v98
    %v221 = vunpack.c.h.b16 %v98
    %v222 = vpack.c.b16 %v160, %v158
    %v223 = vpack.c.b16 %v161, %v159
    %v224 = vpack.c.b16 %v164, %v162
    %v225 = vpack.c.b16 %v165, %v163
    %v226 = vpack.c.b16 %v168, %v166
    %v227 = vpack.c.b16 %v169, %v167
    %v228 = vpack.c.b16 %v172, %v170
    %v229 = vpack.c.b16 %v173, %v171
    %v230 = vpack.c.b16 %v176, %v174
    %v231 = vpack.c.b16 %v177, %v175
    %v232 = vpack.c.b16 %v180, %v178
    %v233 = vpack.c.b16 %v181, %v179
    %v234 = vpack.c.b16 %v184, %v182
    %v235 = vpack.c.b16 %v185, %v183
    %v236 = vpack.c.b16 %v188, %v186
    %v237 = vpack.c.b16 %v189, %v187
    %v238 = vpack.c.b16 %v192, %v190
    %v239 = vpack.c.b16 %v193, %v191
    %v240 = vpack.c.b16 %v196, %v194
    %v241 = vpack.c.b16 %v197, %v195
    %v242 = vpack.c.b16 %v200, %v198
    %v243 = vpack.c.b16 %v201, %v199
    %v244 = vpack.c.b16 %v204, %v202
    %v245 = vpack.c.b16 %v205, %v203
    %v246 = vpack.c.b16 %v208, %v206
    %v247 = vpack.c.b16 %v209, %v207
    %v248 = vpack.c.b16 %v212, %v210
    %v249 = vpack.c.b16 %v213, %v211
    %v250 = vpack.c.b16 %v216, %v214
    %v251 = vpack.c.b16 %v217, %v215
    %v252 = vpack.c.b16 %v220, %v218
    %v253 = vpack.c.b16 %v221, %v219
    %286 = vmatprep.subr.bf16.mxu0 %v237
    %287 = vmatpush1.bf16.msra.mxu0 %v236
    %288 = vmatprep.subr.bf16.mxu0 %v235
    %289 = vmatpush1.bf16.msra.mxu0 %v234
    %290 = vmatprep.subr.bf16.mxu0 %v233
    %291 = vmatpush1.bf16.msra.mxu0 %v232
    %292 = vmatprep.subr.bf16.mxu0 %v231
    %293 = vmatpush1.bf16.msra.mxu0 %v230
    %294 = vmatprep.subr.bf16.mxu0 %v229
    %295 = vmatpush1.bf16.msra.mxu0 %v228
    %296 = vmatprep.subr.bf16.mxu0 %v227
    %297 = vmatpush1.bf16.msra.mxu0 %v226
    %298 = vmatprep.subr.bf16.mxu0 %v225
    %299 = vmatpush1.bf16.msra.mxu0 %v224
    %300 = vmatprep.subr.bf16.mxu0 %v223
    %301 = vmatpush1.bf16.msra.mxu0 %v222
    %302 = vmatprep.subr.bf16.mxu0 %v253
    %303 = vmatpush2.bf16.msra.mxu0 %v252
    %304 = vmatprep.subr.bf16.mxu0 %v251
    %305 = vmatpush2.bf16.msra.mxu0 %v250
    %306 = vmatprep.subr.bf16.mxu0 %v249
    %307 = vmatpush2.bf16.msra.mxu0 %v248
    %308 = vmatprep.subr.bf16.mxu0 %v247
    %309 = vmatpush2.bf16.msra.mxu0 %v246
    %310 = vmatprep.subr.bf16.mxu0 %v245
    %311 = vmatpush2.bf16.msra.mxu0 %v244
    %312 = vmatprep.subr.bf16.mxu0 %v243
    %313 = vmatpush2.bf16.msra.mxu0 %v242
    %314 = vmatprep.subr.bf16.mxu0 %v241
    %315 = vmatpush2.bf16.msra.mxu0 %v240
    %316 = vmatprep.subr.bf16.mxu0 %v239
    %317 = vmatpush2.bf16.msra.mxu0 %v238
    %318 = vmatprep.mubr.bf16.mxu0 %v115
    %319 = vmatmul.mubr.bf16.gmra.mxu0 %v114
    %v320 = vpop.f32.mrf.mxu0
    %v321 = vadd.f32 0.0, %v320
    %v322 = vpop.f32.mrf.mxu0
    %v323 = vadd.f32 0.0, %v322
    %v324 = vpop.f32.mrf.mxu0
    %v325 = vadd.f32 0.0, %v324
    %v326 = vpop.f32.mrf.mxu0
    %v327 = vadd.f32 0.0, %v326
    %328 = vmatprep.mubr.bf16.mxu0 %v117
    %329 = vmatmul.mubr.bf16.gmra.mxu0 %v116
    %v330 = vpop.f32.mrf.mxu0
    %v331 = vadd.f32 0.0, %v330
    %v332 = vpop.f32.mrf.mxu0
    %v333 = vadd.f32 0.0, %v332
    %v334 = vpop.f32.mrf.mxu0
    %v335 = vadd.f32 0.0, %v334
    %v336 = vpop.f32.mrf.mxu0
    %v337 = vadd.f32 0.0, %v336
    %338 = vmatprep.mubr.bf16.mxu0 %v119
    %339 = vmatmul.mubr.bf16.gmra.mxu0 %v118
    %v340 = vpop.f32.mrf.mxu0
    %v341 = vadd.f32 0.0, %v340
    %v342 = vpop.f32.mrf.mxu0
    %v343 = vadd.f32 0.0, %v342
    %v344 = vpop.f32.mrf.mxu0
    %v345 = vpop.f32.mrf.mxu0
    %346 = vdwg.mxu0
    %v347 = vmul.f32 %v321, %v321
    %v348 = vmul.f32 %v325, %v325
    %v349 = vmul.f32 %v331, %v331
    %v350 = vmul.f32 %v335, %v335
    %v351 = vmul.f32 %v341, %v341
    %v352 = vmul.f32 %v323, %v323
    %v353 = vmul.f32 %v327, %v327
    %v354 = vmul.f32 %v333, %v333
    %v355 = vmul.f32 %v337, %v337
    %v356 = vmul.f32 %v343, %v343
    %v357 = vadd.f32 %v347, %v352
    %v358 = vadd.f32 %v348, %v353
    %v359 = vadd.f32 %v349, %v354
    %v360 = vadd.f32 %v350, %v355
    %v361 = vadd.f32 %v351, %v356
    %v362 = vlaneseq
    %v363 = vand.u32 %v362, 127
    %vm364 = vcmp.eq.s32.totalorder %v363, 0
    %v365 = vsel %vm364, 1, 0
    %vm366 = vcmp.eq.s32.totalorder %v365, 1
    %v367 = vsel %vm366, %v347, %v357
    %v368 = vsel %vm366, %v348, %v358
    %v369 = vsel %vm366, %v349, %v359
    %v370 = vsel %vm366, %v350, %v360
    %v371 = vsel %vm366, %v351, %v361
    %v372 = vsel %vm366, %v352, %v357
    %v373 = vsel %vm366, %v353, %v358
    %v374 = vsel %vm366, %v354, %v359
    %v375 = vsel %vm366, %v355, %v360
    %v376 = vsel %vm366, %v356, %v361
    %v377 = vld [vmem:[%s3] sm:$0x1]
    %v378 = vadd.f32 %v367, 1e-30
    %v379 = vadd.f32 %v368, 1e-30
    %v380 = vadd.f32 %v369, 1e-30
    %v381 = vadd.f32 %v370, 1e-30
    %v382 = vadd.f32 %v371, 1e-30
    %v383 = vrsqrt.pop %v378
    %v384 = vrsqrt.pop %v379
    %v385 = vrsqrt.pop %v380
    %v386 = vrsqrt.pop %v381
    %v387 = vrsqrt.pop %v382
    %v389 = vlaneseq
    %v390 = vshrl.u32 %v389, 7
    %v391 = vsub.s32 0, %v390
    %v392 = vrot.slane %v377, %v391
    %v394 = vmul.f32 %v392, %v383
    %v395 = vmul.f32 %v392, %v384
    %v396 = vmul.f32 %v392, %v385
    %v397 = vmul.f32 %v392, %v386
    %v398 = vmul.f32 %v392, %v387
    %v399 = vsub.f32 1.0, %v394
    %v400 = vsub.f32 1.0, %v395
    %v401 = vsub.f32 1.0, %v396
    %v402 = vsub.f32 1.0, %v397
    %v403 = vsub.f32 1.0, %v398
    %v404 = vmax.f32 %v399, 0.0
    %v405 = vmax.f32 %v400, 0.0
    %v406 = vmax.f32 %v401, 0.0
    %v407 = vmax.f32 %v402, 0.0
    %v408 = vmax.f32 %v403, 0.0
    %v409 = vld [vmem:[%s4] sm:$0x1]
    %v410 = vadd.f32 %v372, 1e-30
    %v411 = vadd.f32 %v373, 1e-30
    %v412 = vadd.f32 %v374, 1e-30
    %v413 = vadd.f32 %v375, 1e-30
    %v414 = vadd.f32 %v376, 1e-30
    %v415 = vrsqrt.pop %v410
    %v416 = vrsqrt.pop %v411
    %v417 = vrsqrt.pop %v412
    %v418 = vrsqrt.pop %v413
    %v419 = vrsqrt.pop %v414
    %v421 = vlaneseq
    %v422 = vshrl.u32 %v421, 7
    %v423 = vsub.s32 0, %v422
    %v424 = vrot.slane %v409, %v423
    %v426 = vmul.f32 %v424, %v415
    %v427 = vmul.f32 %v424, %v416
    %v428 = vmul.f32 %v424, %v417
    %v429 = vmul.f32 %v424, %v418
    %v430 = vmul.f32 %v424, %v419
    %v431 = vsub.f32 1.0, %v426
    %v432 = vsub.f32 1.0, %v427
    %v433 = vsub.f32 1.0, %v428
    %v434 = vsub.f32 1.0, %v429
    %v435 = vsub.f32 1.0, %v430
    %v436 = vmax.f32 %v431, 0.0
    %v437 = vmax.f32 %v432, 0.0
    %v438 = vmax.f32 %v433, 0.0
    %v439 = vmax.f32 %v434, 0.0
    %v440 = vmax.f32 %v435, 0.0
    %v441 = vmul.f32 %v321, %v404
    %v442 = vmul.f32 %v323, %v436
    %v443 = vmul.f32 %v325, %v405
    %v444 = vmul.f32 %v327, %v437
    %v445 = vmul.f32 %v331, %v406
    %v446 = vmul.f32 %v333, %v438
    %v447 = vmul.f32 %v335, %v407
    %v448 = vmul.f32 %v337, %v439
    %v449 = vmul.f32 %v341, %v408
    %v450 = vmul.f32 %v343, %v440
    %v451 = vpack.c.bf16 %v443, %v441
    %v452 = vpack.c.bf16 %v444, %v442
    %v453 = vpack.c.bf16 %v447, %v445
    %v454 = vpack.c.bf16 %v448, %v446
    %v455 = vpack.c.bf16 %v449, %v449
    %v456 = vpack.c.bf16 %v450, %v450
    %v457 = vld [vmem:[#allocation7] sm:$0xff]
    %v458 = vld [vmem:[#allocation7 + $0x8] sm:$0xff]
    %v459 = vld [vmem:[#allocation7 + $0x10] sm:$0xff]
    %v460 = vld [vmem:[#allocation7 + $0x18] sm:$0xff]
    %v461 = vld [vmem:[#allocation7 + $0x20] sm:$0xff]
    %v462 = vld [vmem:[#allocation7 + $0x28] sm:$0xff]
    %v463 = vld [vmem:[#allocation7 + $0x30] sm:$0xff]
    %v464 = vld [vmem:[#allocation7 + $0x38] sm:$0xff]
    %v465 = vld [vmem:[#allocation7 + $0x40] sm:$0xff]
    %v466 = vld [vmem:[#allocation7 + $0x48] sm:$0xff]
    %v467 = vld [vmem:[#allocation7 + $0x50] sm:$0xff]
    %v468 = vld [vmem:[#allocation7 + $0x58] sm:$0xff]
    %v469 = vld [vmem:[#allocation7 + $0x60] sm:$0xff]
    %v470 = vld [vmem:[#allocation7 + $0x68] sm:$0xff]
    %v471 = vld [vmem:[#allocation7 + $0x70] sm:$0xff]
    %v472 = vld [vmem:[#allocation7 + $0x78] sm:$0xff]
    %v473 = vld [vmem:[#allocation7 + $0x80] sm:$0xff]
    %v474 = vld [vmem:[#allocation7 + $0x88] sm:$0xff]
    %v475 = vld [vmem:[#allocation7 + $0x90] sm:$0xff]
    %v476 = vld [vmem:[#allocation7 + $0x98] sm:$0xff]
    %v477 = vld [vmem:[#allocation7 + $0xa0] sm:$0xff]
    %v478 = vld [vmem:[#allocation7 + $0xa8] sm:$0xff]
    %v479 = vld [vmem:[#allocation7 + $0xb0] sm:$0xff]
    %v480 = vld [vmem:[#allocation7 + $0xb8] sm:$0xff]
    %v481 = vld [vmem:[#allocation7 + $0xc0] sm:$0xff]
    %v482 = vld [vmem:[#allocation7 + $0xc8] sm:$0xff]
    %v483 = vld [vmem:[#allocation7 + $0xd0] sm:$0xff]
    %v484 = vld [vmem:[#allocation7 + $0xd8] sm:$0xff]
    %v485 = vld [vmem:[#allocation7 + $0xe0] sm:$0xff]
    %v486 = vld [vmem:[#allocation7 + $0xe8] sm:$0xff]
    %v487 = vld [vmem:[#allocation7 + $0xf0] sm:$0xff]
    %v488 = vld [vmem:[#allocation7 + $0xf8] sm:$0xff]
    %v521 = vunpack.c.l.b16 %v457
    %v522 = vunpack.c.h.b16 %v457
    %v523 = vunpack.c.l.b16 %v458
    %v524 = vunpack.c.h.b16 %v458
    %v525 = vunpack.c.l.b16 %v459
    %v526 = vunpack.c.h.b16 %v459
    %v527 = vunpack.c.l.b16 %v460
    %v528 = vunpack.c.h.b16 %v460
    %v529 = vunpack.c.l.b16 %v461
    %v530 = vunpack.c.h.b16 %v461
    %v531 = vunpack.c.l.b16 %v462
    %v532 = vunpack.c.h.b16 %v462
    %v533 = vunpack.c.l.b16 %v463
    %v534 = vunpack.c.h.b16 %v463
    %v535 = vunpack.c.l.b16 %v464
    %v536 = vunpack.c.h.b16 %v464
    %v537 = vunpack.c.l.b16 %v465
    %v538 = vunpack.c.h.b16 %v465
    %v539 = vunpack.c.l.b16 %v466
    %v540 = vunpack.c.h.b16 %v466
    %v541 = vunpack.c.l.b16 %v467
    %v542 = vunpack.c.h.b16 %v467
    %v543 = vunpack.c.l.b16 %v468
    %v544 = vunpack.c.h.b16 %v468
    %v545 = vunpack.c.l.b16 %v469
    %v546 = vunpack.c.h.b16 %v469
    %v547 = vunpack.c.l.b16 %v470
    %v548 = vunpack.c.h.b16 %v470
    %v549 = vunpack.c.l.b16 %v471
    %v550 = vunpack.c.h.b16 %v471
    %v551 = vunpack.c.l.b16 %v472
    %v552 = vunpack.c.h.b16 %v472
    %v553 = vunpack.c.l.b16 %v473
    %v554 = vunpack.c.h.b16 %v473
    %v555 = vunpack.c.l.b16 %v474
    %v556 = vunpack.c.h.b16 %v474
    %v557 = vunpack.c.l.b16 %v475
    %v558 = vunpack.c.h.b16 %v475
    %v559 = vunpack.c.l.b16 %v476
    %v560 = vunpack.c.h.b16 %v476
    %v561 = vunpack.c.l.b16 %v477
    %v562 = vunpack.c.h.b16 %v477
    %v563 = vunpack.c.l.b16 %v478
    %v564 = vunpack.c.h.b16 %v478
    %v565 = vunpack.c.l.b16 %v479
    %v566 = vunpack.c.h.b16 %v479
    %v567 = vunpack.c.l.b16 %v480
    %v568 = vunpack.c.h.b16 %v480
    %v569 = vunpack.c.l.b16 %v481
    %v570 = vunpack.c.h.b16 %v481
    %v571 = vunpack.c.l.b16 %v482
    %v572 = vunpack.c.h.b16 %v482
    %v573 = vunpack.c.l.b16 %v483
    %v574 = vunpack.c.h.b16 %v483
    %v575 = vunpack.c.l.b16 %v484
    %v576 = vunpack.c.h.b16 %v484
    %v577 = vunpack.c.l.b16 %v485
    %v578 = vunpack.c.h.b16 %v485
    %v579 = vunpack.c.l.b16 %v486
    %v580 = vunpack.c.h.b16 %v486
    %v581 = vunpack.c.l.b16 %v487
    %v582 = vunpack.c.h.b16 %v487
    %v583 = vunpack.c.l.b16 %v488
    %v584 = vunpack.c.h.b16 %v488
    %v585 = vpack.c.b16 %v523, %v521
    %v586 = vpack.c.b16 %v524, %v522
    %v587 = vpack.c.b16 %v527, %v525
    %v588 = vpack.c.b16 %v528, %v526
    %v589 = vpack.c.b16 %v531, %v529
    %v590 = vpack.c.b16 %v532, %v530
    %v591 = vpack.c.b16 %v535, %v533
    %v592 = vpack.c.b16 %v536, %v534
    %v593 = vpack.c.b16 %v539, %v537
    %v594 = vpack.c.b16 %v540, %v538
    %v595 = vpack.c.b16 %v543, %v541
    %v596 = vpack.c.b16 %v544, %v542
    %v597 = vpack.c.b16 %v547, %v545
    %v598 = vpack.c.b16 %v548, %v546
    %v599 = vpack.c.b16 %v551, %v549
    %v600 = vpack.c.b16 %v552, %v550
    %v601 = vpack.c.b16 %v555, %v553
    %v602 = vpack.c.b16 %v556, %v554
    %v603 = vpack.c.b16 %v559, %v557
    %v604 = vpack.c.b16 %v560, %v558
    %v605 = vpack.c.b16 %v563, %v561
    %v606 = vpack.c.b16 %v564, %v562
    %v607 = vpack.c.b16 %v567, %v565
    %v608 = vpack.c.b16 %v568, %v566
    %v609 = vpack.c.b16 %v571, %v569
    %v610 = vpack.c.b16 %v572, %v570
    %v611 = vpack.c.b16 %v575, %v573
    %v612 = vpack.c.b16 %v576, %v574
    %v613 = vpack.c.b16 %v579, %v577
    %v614 = vpack.c.b16 %v580, %v578
    %v615 = vpack.c.b16 %v583, %v581
    %v616 = vpack.c.b16 %v584, %v582
    %649 = vmatprep.subr.bf16.mxu0 %v600
    %650 = vmatpush1.bf16.msra.mxu0 %v599
    %651 = vmatprep.subr.bf16.mxu0 %v598
    %652 = vmatpush1.bf16.msra.mxu0 %v597
    %653 = vmatprep.subr.bf16.mxu0 %v596
    %654 = vmatpush1.bf16.msra.mxu0 %v595
    %655 = vmatprep.subr.bf16.mxu0 %v594
    %656 = vmatpush1.bf16.msra.mxu0 %v593
    %657 = vmatprep.subr.bf16.mxu0 %v592
    %658 = vmatpush1.bf16.msra.mxu0 %v591
    %659 = vmatprep.subr.bf16.mxu0 %v590
    %660 = vmatpush1.bf16.msra.mxu0 %v589
    %661 = vmatprep.subr.bf16.mxu0 %v588
    %662 = vmatpush1.bf16.msra.mxu0 %v587
    %663 = vmatprep.subr.bf16.mxu0 %v586
    %664 = vmatpush1.bf16.msra.mxu0 %v585
    %665 = vmatprep.subr.bf16.mxu0 %v616
    %666 = vmatpush2.bf16.msra.mxu0 %v615
    %667 = vmatprep.subr.bf16.mxu0 %v614
    %668 = vmatpush2.bf16.msra.mxu0 %v613
    %669 = vmatprep.subr.bf16.mxu0 %v612
    %670 = vmatpush2.bf16.msra.mxu0 %v611
    %671 = vmatprep.subr.bf16.mxu0 %v610
    %672 = vmatpush2.bf16.msra.mxu0 %v609
    %673 = vmatprep.subr.bf16.mxu0 %v608
    %674 = vmatpush2.bf16.msra.mxu0 %v607
    %675 = vmatprep.subr.bf16.mxu0 %v606
    %676 = vmatpush2.bf16.msra.mxu0 %v605
    %677 = vmatprep.subr.bf16.mxu0 %v604
    %678 = vmatpush2.bf16.msra.mxu0 %v603
    %679 = vmatprep.subr.bf16.mxu0 %v602
    %680 = vmatpush2.bf16.msra.mxu0 %v601
    %681 = vmatprep.mubr.bf16.mxu0 %v452
    %682 = vmatmul.mubr.bf16.gmra.mxu0 %v451
    %v683 = vpop.f32.mrf.mxu0
    %v684 = vadd.f32 0.0, %v683
    %v685 = vpop.f32.mrf.mxu0
    %v686 = vadd.f32 0.0, %v685
    %v687 = vpop.f32.mrf.mxu0
    %v688 = vadd.f32 0.0, %v687
    %v689 = vpop.f32.mrf.mxu0
    %v690 = vadd.f32 0.0, %v689
    %691 = vmatprep.mubr.bf16.mxu0 %v454
    %692 = vmatmul.mubr.bf16.gmra.mxu0 %v453
    %v693 = vpop.f32.mrf.mxu0
    %v694 = vadd.f32 0.0, %v693
    %v695 = vpop.f32.mrf.mxu0
    %v696 = vadd.f32 0.0, %v695
    %v697 = vpop.f32.mrf.mxu0
    %v698 = vadd.f32 0.0, %v697
    %v699 = vpop.f32.mrf.mxu0
    %v700 = vadd.f32 0.0, %v699
    %701 = vmatprep.mubr.bf16.mxu0 %v456
    %702 = vmatmul.mubr.bf16.gmra.mxu0 %v455
    %v703 = vpop.f32.mrf.mxu0
    %v704 = vadd.f32 0.0, %v703
    %v705 = vpop.f32.mrf.mxu0
    %v706 = vadd.f32 0.0, %v705
    %v707 = vpop.f32.mrf.mxu0
    %v708 = vpop.f32.mrf.mxu0
    %709 = vdwg.mxu0
    %710 = vst [vmem:[#allocation8] sm:$0xff] %v684
    %711 = vst [vmem:[#allocation8 + $0x8] sm:$0xff] %v686
    %712 = vst [vmem:[#allocation8 + $0x10] sm:$0xff] %v688
    %713 = vst [vmem:[#allocation8 + $0x18] sm:$0xff] %v690
    %714 = vst [vmem:[#allocation8 + $0x20] sm:$0xff] %v694
    %715 = vst [vmem:[#allocation8 + $0x28] sm:$0xff] %v696
    %716 = vst [vmem:[#allocation8 + $0x30] sm:$0xff] %v698
    %717 = vst [vmem:[#allocation8 + $0x38] sm:$0xff] %v700
    %718 = vst [vmem:[#allocation8 + $0x40] sm:$0xff] %v704
    %719 = vst [vmem:[#allocation8 + $0x48] sm:$0xff] %v706
    // Predicated region
    $region34: #{tpu_custom_call.1} parent=1 // pred_check
      _
    $region35: #{tpu_custom_call.1} parent=1 // pred_check_branch
      %721 = sbr.rel (0) target = $region37
    $region36: #{tpu_custom_call.1} parent=1 // pred_region
      %s723 = ssub.s32 1280, 1280
      %724 = vsyncadd [#allocation4], %s723
      %s725 = sshll.u32 [#allocation8], 4
      %s726 = int_to_ptr.vmem [resolvable:$true] %s725
      %731 = dma.vmem_to_hbm [thread:$0]  %s726, 1280, %s5, [#allocation4], 256, 256, 16
    $region37: #{tpu_custom_call.1} parent=1 // pred_fallthru
      _
    // Predicated region
    $region38: #{tpu_custom_call.1} parent=1 // pred_check
      _
    $region39: #{tpu_custom_call.1} parent=1 // pred_check_branch
      %733 = sbr.rel (0) target = $region41
    $region40: #{tpu_custom_call.1} parent=1 // pred_region
      %734 = dma.done [#allocation4], 1280
    $region41: #{tpu_custom_call.1} parent=1 // pred_fallthru
      _
    %735 = vsyncpa [#allocation3], 1
    %736 = vsyncpa [#allocation6], 1
    %737 = vsyncpa [#allocation4], 1

</llo_original>
